<compile_context>
chip_gen: v6e
topology: v6e:2x2x1
jax: 0.10.0
libtpu: 0.0.40
codegen_flags: <defaults>
</compile_context>

<pallas_src>
import functools

import jax
import jax.numpy as jnp
import numpy as np
from jax.experimental import pallas as pl
from jax.experimental.pallas import tpu as pltpu


def _round_up(x, m):
    return (x + m - 1) // m * m


def _cdiv(a, b):
    return -(-a // b)


def _choose_tiling(B, tile_b_max):
    """Pick (tile_b, num_tiles, padded_B).

    * tile_b is a multiple of 128, capped at tile_b_max (<=4096 keeps VMEM
      comfortable even on v7x's 64 MiB).
    * when the batch allows it we keep num_tiles >= 2 and even so the
      'parallel' grid axis actually splits across v7x's two TensorCores.
    """
    tile_b_max = max(128, _round_up(tile_b_max, 128))
    Bp128 = _round_up(max(B, 1), 128)
    if Bp128 <= tile_b_max:
        if Bp128 >= 256:
            tile_b = _round_up(_cdiv(Bp128, 2), 128)   # split across 2 TCs
        else:
            tile_b = Bp128
    else:
        num = _cdiv(Bp128, tile_b_max)
        if num % 2:                                    # even tile count (v7x)
            num += 1
        tile_b = _round_up(_cdiv(Bp128, num), 128)
    Bp = _round_up(Bp128, tile_b)
    return tile_b, Bp // tile_b, Bp


def _qmix_kernel(x_ref,                   # (S+5, tile_b)  [states ; q] tile
                 wT_ref, bcol_ref,        # fused hypernet: (8H, S+5), (8H, 1)
                 b2bw_ref, b2bb_ref,      # hyper_b2 layer 1: (H, 1), (1, 1)
                 out_ref,                 # (1, tile_b) lane-dense output row
                 *, H, S):
    x = x_ref[...]                                        # (S+5, tb)

    # One fused, transposed hypernet matmul. Row blocks of z:
    #   [0, 5H)   : hyper_w1 (5 blocks of H, one per q value)
    #   [5H, 6H)  : hyper_b1
    #   [6H, 7H)  : hyper_w2
    #   [7H, 8H)  : hyper_b2 layer 0
    # The 5 trailing columns of wT are zero, so the q rows of x are inert here.
    z = (jnp.dot(wT_ref[...], x, preferred_element_type=jnp.float32)
         + bcol_ref[...])                                 # (8H, tb)

    # hidden = b1 + sum_a q[a] * |w1_a|      (the torch bmm(q_values, w1))
    hidden = z[5 * H:6 * H, :]                            # (H, tb)
    for a in range(5):                     # static unroll over the 5 q-values
        q_a = x_ref[pl.ds(S + a, 1), :]                   # (1, tb) q row
        hidden = hidden + q_a * jnp.abs(z[a * H:(a + 1) * H, :])

    # ELU (alpha = 1); clamp the discarded positive branch of exp.
    hidden = jnp.where(hidden > 0, hidden,
                       jnp.exp(jnp.minimum(hidden, 0.0)) - 1.0)

    # w2 = |hyper_w2(states)|, hyper_b2 layer 0 relu.
    w2 = jnp.abs(z[6 * H:7 * H, :])                       # (H, tb)
    h2 = jnp.maximum(z[7 * H:8 * H, :], 0.0)              # (H, tb)

    #   q_total = sum_h(hidden*w2) + sum_h(relu(h2)*b2b_w) + b2b_b
    combined = hidden * w2 + h2 * b2bw_ref[...]           # (H, tb)

    # Reduce over H on the MXU (idle otherwise) instead of an XLU reduce.
    ones_row = jnp.ones((1, H), jnp.float32)
    q_tot = (jnp.dot(ones_row, combined, preferred_element_type=jnp.float32)
             + b2bb_ref[...])                             # (1, tb)

    out_ref[...] = q_tot                                  # no transpose needed


def fuse_qmix_params(params, state_shape, qmix_hidden_dim):
    """Fuse the four state-conditioned projections once (hoisted out of the
    per-call path): transposed (output-major) weight with 5 zero columns for
    the q rows appended to the activation tile."""
    S, H = state_shape, qmix_hidden_dim
    w1_cat = jnp.transpose(params["w1_w"], (1, 0, 2)).reshape(S, 5 * H)
    w_all = jnp.concatenate(
        [w1_cat, params["b1_w"], params["w2_w"], params["b2a_w"]], axis=1)
    w_allT = jnp.concatenate(
        [w_all.T, jnp.zeros((8 * H, 5), jnp.float32)], axis=1)   # (8H, S+5)
    b_col = jnp.concatenate(
        [params["w1_b"].reshape(-1), params["b1_b"].reshape(-1),
         params["w2_b"].reshape(-1), params["b2a_b"].reshape(-1)]
    ).reshape(8 * H, 1)
    return dict(w_allT=w_allT, b_col=b_col,
                b2bw_col=params["b2b_w"].reshape(H, 1),   # (H, 1)
                b2bb=params["b2b_b"].reshape(1, 1))       # (1, 1)


def qmix_forward(q_values, states, fused, *, qmix_hidden_dim, tile_b_max=4096):
    steps, n_agents, _ = q_values.shape
    S = states.shape[-1]
    H = qmix_hidden_dim
    B = steps * n_agents

    tile_b, num_tiles, Bp = _choose_tiling(B, tile_b_max)

    # Single fused, transposed activation stream: rows [0,S) = states^T,
    # rows [S, S+5) = q^T. Pad/concat/transpose fuse into one wrapper copy.
    q_t = q_values.reshape(B, 5).astype(jnp.float32).T    # (5, B)
    s_t = states.reshape(B, S).astype(jnp.float32).T      # (S, B)
    x_t = jnp.concatenate([s_t, q_t], axis=0)             # (S+5, B)
    if Bp > B:
        x_t = jnp.pad(x_t, ((0, 0), (0, Bp - B)))

    # Constant-index weight blocks stay VMEM-resident across grid steps.
    def full(shape):
        return pl.BlockSpec(shape, lambda i, _n=len(shape): (0,) * _n)

    out = pl.pallas_call(
        functools.partial(_qmix_kernel, H=H, S=S),
        out_shape=jax.ShapeDtypeStruct((1, Bp), jnp.float32),
        grid_spec=pltpu.PrefetchScalarGridSpec(
            num_scalar_prefetch=0,
            grid=(num_tiles,),
            in_specs=[
                pl.BlockSpec((S + 5, tile_b), lambda i: (0, i)),  # activations
                full((8 * H, S + 5)),                             # fused W^T
                full((8 * H, 1)),                                 # fused bias
                full((H, 1)),                                     # b2b weight
                full((1, 1)),                                     # b2b bias
            ],
            out_specs=pl.BlockSpec((1, tile_b), lambda i: (0, i)),
        ),
        compiler_params=pltpu.CompilerParams(
            dimension_semantics=("parallel",)),
    )(x_t, fused["w_allT"], fused["b_col"], fused["b2bw_col"], fused["b2bb"])

    return out.reshape(Bp)[:B].reshape(steps, n_agents, 1)


def init_params(key, state_shape, qmix_hidden_dim):
    """Deterministic synthetic init (torch-style uniform(-1/sqrt(in), 1/sqrt(in)))."""
    S, H = state_shape, qmix_hidden_dim
    keys = jax.random.split(key, 12)

    def lin(kw, kb, fan_in, shape_w, shape_b):
        bound = 1.0 / np.sqrt(fan_in)
        w = jax.random.uniform(kw, shape_w, jnp.float32, -bound, bound)
        b = jax.random.uniform(kb, shape_b, jnp.float32, -bound, bound)
        return w, b

    # hyper_w1: Linear(S, 5*H), stored as 5 stacked (S, H) blocks so that
    # block `a` matches torch's view(-1, 5, H) slice w1[:, a, :].
    w1_w_flat, w1_b_flat = lin(keys[0], keys[1], S, (S, 5 * H), (5 * H,))
    w1_w = jnp.transpose(w1_w_flat.reshape(S, 5, H), (1, 0, 2))   # (5, S, H)
    w1_b = w1_b_flat.reshape(5, H)                                # (5, H)

    b1_w, b1_b = lin(keys[2], keys[3], S, (S, H), (1, H))
    w2_w, w2_b = lin(keys[4], keys[5], S, (S, H), (1, H))
    b2a_w, b2a_b = lin(keys[6], keys[7], S, (S, H), (1, H))
    b2b_w, b2b_b = lin(keys[8], keys[9], H, (H, 1), (1, 1))

    return dict(w1_w=w1_w, w1_b=w1_b, b1_w=b1_w, b1_b=b1_b,
                w2_w=w2_w, w2_b=w2_b, b2a_w=b2a_w, b2a_b=b2a_b,
                b2b_w=b2b_w, b2b_b=b2b_b)


def qmix_reference(q_values, states, params, qmix_hidden_dim):
    """Pure-JAX mirror of the torch forward, for verification."""
    steps, n_agents, _ = q_values.shape
    S = states.shape[-1]
    H = qmix_hidden_dim
    B = steps * n_agents
    q = q_values.reshape(B, 1, 5)
    s = states.reshape(B, S)

    w1_flat = jnp.einsum('bs,ash->bah', s, params["w1_w"]) + params["w1_b"]  # (B,5,H)
    w1 = jnp.abs(w1_flat)
    b1 = (s @ params["b1_w"] + params["b1_b"]).reshape(B, 1, H)
    hidden = jax.nn.elu(jnp.einsum('bqa,bah->bqh', q, w1) + b1)              # (B,1,H)

    w2 = jnp.abs(s @ params["w2_w"] + params["w2_b"]).reshape(B, H, 1)
    h2 = jax.nn.relu(s @ params["b2a_w"] + params["b2a_b"])
    b2 = (h2 @ params["b2b_w"] + params["b2b_b"]).reshape(B, 1, 1)
    q_total = jnp.einsum('bqh,bho->bqo', hidden, w2) + b2
    return q_total.reshape(steps, n_agents, 1)


if __name__ == "__main__":
    state_shape = 32
    qmix_hidden_dim = 32
    steps, n_agents = 4, 8          # B = 32 (padded to one 128-lane tile)

    key = jax.random.PRNGKey(0)
    kp, kq, ks = jax.random.split(key, 3)
    params = init_params(kp, state_shape, qmix_hidden_dim)
    fused = fuse_qmix_params(params, state_shape, qmix_hidden_dim)

    q_values = jax.random.normal(kq, (steps, n_agents, 5), jnp.float32)
    states = jax.random.normal(ks, (steps, n_agents, state_shape), jnp.float32)

    out = qmix_forward(q_values, states, fused,
                       qmix_hidden_dim=qmix_hidden_dim, tile_b_max=4096)
    out = jax.block_until_ready(out)

    ref = qmix_reference(q_values, states, params, qmix_hidden_dim)
    np.testing.assert_allclose(np.asarray(out), np.asarray(ref),
                               rtol=1e-4, atol=1e-4)
    assert out.shape == (steps, n_agents, 1)
    print("KERNEL_OK")
</pallas_src>

<mosaic_0001>
module attributes {stable_mosaic.version = 11 : i64} {
  func.func @_qmix_kernel(%arg0: i32, %arg1: memref<37x128xf32, #tpu.memory_space<vmem>>, %arg2: memref<256x37xf32, #tpu.memory_space<vmem>>, %arg3: memref<256x1xf32, #tpu.memory_space<vmem>>, %arg4: memref<32x1xf32, #tpu.memory_space<vmem>>, %arg5: memref<1x1xf32, #tpu.memory_space<vmem>>, %arg6: memref<1x128xf32, #tpu.memory_space<vmem>>) attributes {dimension_semantics = [#tpu.dimension_semantics<parallel>], iteration_bounds = array<i64: 1>, scalar_prefetch = 0 : i64, scratch_operands = 0 : i64, tpu.core_type = #tpu.core_type<tc>, window_params = [{transform_indices = @transform_0, window_bounds = array<i64: 37, 128>}, {pipeline_mode = #tpu.pipeline_mode<synchronous>, transform_indices = @transform_1, window_bounds = array<i64: 256, 37>}, {pipeline_mode = #tpu.pipeline_mode<synchronous>, transform_indices = @transform_2, window_bounds = array<i64: 256, 1>}, {pipeline_mode = #tpu.pipeline_mode<synchronous>, transform_indices = @transform_3, window_bounds = array<i64: 32, 1>}, {pipeline_mode = #tpu.pipeline_mode<synchronous>, transform_indices = @transform_4, window_bounds = array<i64: 1, 1>}, {transform_indices = @transform_5, window_bounds = array<i64: 1, 128>}]} {
    %c0 = arith.constant 0 : index
    %c0_0 = arith.constant 0 : index
    %0 = vector.load %arg1[%c0, %c0_0] : memref<37x128xf32, #tpu.memory_space<vmem>>, vector<37x128xf32>
    %c0_1 = arith.constant 0 : index
    %c0_2 = arith.constant 0 : index
    %1 = vector.load %arg2[%c0_1, %c0_2] : memref<256x37xf32, #tpu.memory_space<vmem>>, vector<256x37xf32>
    %cst = arith.constant dense<0.000000e+00> : vector<256x128xf32>
    %2 = tpu.matmul %1, %0, %cst {dimension_numbers = #tpu.dot_dimension_numbers<[1], [0], [0], [1], [0, 0, 1, 1], [], []>} : vector<256x37xf32>, vector<37x128xf32>, vector<256x128xf32> -> vector<256x128xf32>
    %c0_3 = arith.constant 0 : index
    %c0_4 = arith.constant 0 : index
    %3 = vector.load %arg3[%c0_3, %c0_4] : memref<256x1xf32, #tpu.memory_space<vmem>>, vector<256x1xf32>
    %4 = vector.broadcast %3 : vector<256x1xf32> to vector<256x128xf32>
    %5 = arith.addf %2, %4 : vector<256x128xf32>
    %6 = vector.extract_strided_slice %5 {offsets = [160, 0], sizes = [32, 128], strides = [1, 1]} : vector<256x128xf32> to vector<32x128xf32>
    %c32 = arith.constant 32 : index
    %c0_5 = arith.constant 0 : index
    %7 = vector.load %arg1[%c32, %c0_5] : memref<37x128xf32, #tpu.memory_space<vmem>>, vector<1x128xf32>
    %8 = vector.extract_strided_slice %5 {offsets = [0, 0], sizes = [32, 128], strides = [1, 1]} : vector<256x128xf32> to vector<32x128xf32>
    %9 = math.absf %8 : vector<32x128xf32>
    %10 = vector.broadcast %7 : vector<1x128xf32> to vector<32x128xf32>
    %11 = arith.mulf %10, %9 : vector<32x128xf32>
    %12 = arith.addf %6, %11 : vector<32x128xf32>
    %c33 = arith.constant 33 : index
    %c0_6 = arith.constant 0 : index
    %13 = vector.load %arg1[%c33, %c0_6] : memref<37x128xf32, #tpu.memory_space<vmem>>, vector<1x128xf32>
    %14 = vector.extract_strided_slice %5 {offsets = [32, 0], sizes = [32, 128], strides = [1, 1]} : vector<256x128xf32> to vector<32x128xf32>
    %15 = math.absf %14 : vector<32x128xf32>
    %16 = vector.broadcast %13 : vector<1x128xf32> to vector<32x128xf32>
    %17 = arith.mulf %16, %15 : vector<32x128xf32>
    %18 = arith.addf %12, %17 : vector<32x128xf32>
    %c34 = arith.constant 34 : index
    %c0_7 = arith.constant 0 : index
    %19 = vector.load %arg1[%c34, %c0_7] : memref<37x128xf32, #tpu.memory_space<vmem>>, vector<1x128xf32>
    %20 = vector.extract_strided_slice %5 {offsets = [64, 0], sizes = [32, 128], strides = [1, 1]} : vector<256x128xf32> to vector<32x128xf32>
    %21 = math.absf %20 : vector<32x128xf32>
    %22 = vector.broadcast %19 : vector<1x128xf32> to vector<32x128xf32>
    %23 = arith.mulf %22, %21 : vector<32x128xf32>
    %24 = arith.addf %18, %23 : vector<32x128xf32>
    %c35 = arith.constant 35 : index
    %c0_8 = arith.constant 0 : index
    %25 = vector.load %arg1[%c35, %c0_8] : memref<37x128xf32, #tpu.memory_space<vmem>>, vector<1x128xf32>
    %26 = vector.extract_strided_slice %5 {offsets = [96, 0], sizes = [32, 128], strides = [1, 1]} : vector<256x128xf32> to vector<32x128xf32>
    %27 = math.absf %26 : vector<32x128xf32>
    %28 = vector.broadcast %25 : vector<1x128xf32> to vector<32x128xf32>
    %29 = arith.mulf %28, %27 : vector<32x128xf32>
    %30 = arith.addf %24, %29 : vector<32x128xf32>
    %c36 = arith.constant 36 : index
    %c0_9 = arith.constant 0 : index
    %31 = vector.load %arg1[%c36, %c0_9] : memref<37x128xf32, #tpu.memory_space<vmem>>, vector<1x128xf32>
    %32 = vector.extract_strided_slice %5 {offsets = [128, 0], sizes = [32, 128], strides = [1, 1]} : vector<256x128xf32> to vector<32x128xf32>
    %33 = math.absf %32 : vector<32x128xf32>
    %34 = vector.broadcast %31 : vector<1x128xf32> to vector<32x128xf32>
    %35 = arith.mulf %34, %33 : vector<32x128xf32>
    %36 = arith.addf %30, %35 : vector<32x128xf32>
    %cst_10 = arith.constant 0.000000e+00 : f32
    %37 = vector.broadcast %cst_10 : f32 to vector<32x128xf32>
    %38 = arith.cmpf ogt, %36, %37 : vector<32x128xf32>
    %cst_11 = arith.constant 0.000000e+00 : f32
    %39 = vector.broadcast %cst_11 : f32 to vector<32x128xf32>
    %40 = arith.minimumf %36, %39 : vector<32x128xf32>
    %41 = math.exp %40 : vector<32x128xf32>
    %cst_12 = arith.constant 1.000000e+00 : f32
    %42 = vector.broadcast %cst_12 : f32 to vector<32x128xf32>
    %43 = arith.subf %41, %42 : vector<32x128xf32>
    %44 = arith.select %38, %36, %43 : vector<32x128xi1>, vector<32x128xf32>
    %45 = vector.extract_strided_slice %5 {offsets = [192, 0], sizes = [32, 128], strides = [1, 1]} : vector<256x128xf32> to vector<32x128xf32>
    %46 = math.absf %45 : vector<32x128xf32>
    %47 = vector.extract_strided_slice %5 {offsets = [224, 0], sizes = [32, 128], strides = [1, 1]} : vector<256x128xf32> to vector<32x128xf32>
    %cst_13 = arith.constant 0.000000e+00 : f32
    %48 = vector.broadcast %cst_13 : f32 to vector<32x128xf32>
    %49 = arith.maximumf %47, %48 : vector<32x128xf32>
    %50 = arith.mulf %44, %46 : vector<32x128xf32>
    %c0_14 = arith.constant 0 : index
    %c0_15 = arith.constant 0 : index
    %51 = vector.load %arg4[%c0_14, %c0_15] : memref<32x1xf32, #tpu.memory_space<vmem>>, vector<32x1xf32>
    %52 = vector.broadcast %51 : vector<32x1xf32> to vector<32x128xf32>
    %53 = arith.mulf %49, %52 : vector<32x128xf32>
    %54 = arith.addf %50, %53 : vector<32x128xf32>
    %cst_16 = arith.constant 1.000000e+00 : f32
    %55 = vector.broadcast %cst_16 : f32 to vector<1x32xf32>
    %cst_17 = arith.constant dense<0.000000e+00> : vector<1x128xf32>
    %56 = tpu.matmul %55, %54, %cst_17 {dimension_numbers = #tpu.dot_dimension_numbers<[1], [0], [0], [1], [0, 0, 1, 1], [], []>} : vector<1x32xf32>, vector<32x128xf32>, vector<1x128xf32> -> vector<1x128xf32>
    %c0_18 = arith.constant 0 : index
    %c0_19 = arith.constant 0 : index
    %57 = vector.load %arg5[%c0_18, %c0_19] : memref<1x1xf32, #tpu.memory_space<vmem>>, vector<1x1xf32>
    %58 = vector.broadcast %57 : vector<1x1xf32> to vector<1x128xf32>
    %59 = arith.addf %56, %58 : vector<1x128xf32>
    %c0_20 = arith.constant 0 : index
    %c0_21 = arith.constant 0 : index
    %60 = vector.load %arg6[%c0_20, %c0_21] : memref<1x128xf32, #tpu.memory_space<vmem>>, vector<1x128xf32>
    tpu.vector_store %arg6[%c0_20, %c0_21], %59 {strides = array<i32>} : memref<1x128xf32, #tpu.memory_space<vmem>>, vector<1x128xf32>,
    return
  }
  func.func @transform_0(%arg0: i32) -> (i32, i32) {
    %c0_i32 = arith.constant 0 : i32
    %c0_i32_0 = arith.constant 0 : i32
    return %c0_i32, %arg0 : i32, i32
  }
  func.func @transform_1(%arg0: i32) -> (i32, i32) {
    %c0_i32 = arith.constant 0 : i32
    %c0_i32_0 = arith.constant 0 : i32
    %c0_i32_1 = arith.constant 0 : i32
    return %c0_i32, %c0_i32_0 : i32, i32
  }
  func.func @transform_2(%arg0: i32) -> (i32, i32) {
    %c0_i32 = arith.constant 0 : i32
    %c0_i32_0 = arith.constant 0 : i32
    %c0_i32_1 = arith.constant 0 : i32
    return %c0_i32, %c0_i32_0 : i32, i32
  }
  func.func @transform_3(%arg0: i32) -> (i32, i32) {
    %c0_i32 = arith.constant 0 : i32
    %c0_i32_0 = arith.constant 0 : i32
    %c0_i32_1 = arith.constant 0 : i32
    return %c0_i32, %c0_i32_0 : i32, i32
  }
  func.func @transform_4(%arg0: i32) -> (i32, i32) {
    %c0_i32 = arith.constant 0 : i32
    %c0_i32_0 = arith.constant 0 : i32
    %c0_i32_1 = arith.constant 0 : i32
    return %c0_i32, %c0_i32_0 : i32, i32
  }
  func.func @transform_5(%arg0: i32) -> (i32, i32) {
    %c0_i32 = arith.constant 0 : i32
    %c0_i32_0 = arith.constant 0 : i32
    return %c0_i32, %arg0 : i32, i32
  }
}

</mosaic_0001>

<llo_original>
// kernel: tpu_custom_call.1
$region0: #{tpu_custom_call.1}
  #allocation0 [shape = 'u32[]', space=smem, size = 0x4, offset = 0x4, fixed_abs, tag = 'smem constant byte address 0x4 - core index']
  #allocation1 [shape = 'u32[144,128]{1,0:T(1,128)}', space=vmem, size = 0x12000, scoped, tag = 'internal scratch']
  #allocation2 [shape = 'f32[1,1]{1,0:T(1,128)S(1)}', space=vmem, size = 0x200, scoped, tag = 'scoped memory for tpu_custom_call.1']
  %s0 = inlined_call_operand.vmem [shape: f32[37,128], index: 0, kind: input, shape index: {}]
  %s1 = inlined_call_operand.vmem [shape: f32[256,37], index: 1, kind: input, shape index: {}]
  %s2 = inlined_call_operand.vmem [shape: f32[256,1], index: 2, kind: input, shape index: {}]
  %s3 = inlined_call_operand.vmem [shape: f32[32,1], index: 3, kind: input, shape index: {}]
  %s4 = inlined_call_operand.<no memory space> [shape: f32[1,1], index: 4, kind: input, shape index: {}]
  %s5 = inlined_call_operand.hbm [shape: f32[1,128], index: 5, kind: output, shape index: {}]
  %s6 = sld [smem:[#allocation0]]
  $region30: #{tpu_custom_call.1} parent=0
    _
  %s8 = ssub.s32 1, %s6
  %s9 = scalar_select 0, %s8, %s6
  %v10 = vstv %s4
  %11 = vst [vmem:[#allocation2] sm:$0x1] %v10
  $region1: #{tpu_custom_call.1} parent=0
    #allocation3 [shape = 'u8[512]{0}', space=vmem, size = 0x400, scoped, tag = 'output window, operand 0, single buffered']
    #allocation4 [shape = 's32[1]{0}', space=sflag, size = 0x4, scoped, tag = 'scoped memory for tpu_custom_call.1']
    %12 = vsyncpa [#allocation4], 0
    // Predicated region
    $region2: #{tpu_custom_call.1} parent=1 // pred_check
      _
    $region3: #{tpu_custom_call.1} parent=1 // pred_check_branch
      %14 = sbr.rel (0) target = $region5
    $region4: #{tpu_custom_call.1} parent=1 // pred_region
      _
    $region5: #{tpu_custom_call.1} parent=1 // pred_fallthru
      _
    // Predicated region
    $region6: #{tpu_custom_call.1} parent=1 // pred_check
      _
    $region7: #{tpu_custom_call.1} parent=1 // pred_check_branch
      %16 = sbr.rel (0) target = $region9
    $region8: #{tpu_custom_call.1} parent=1 // pred_region
      _
    $region9: #{tpu_custom_call.1} parent=1 // pred_fallthru
      _
    // Predicated region
    $region10: #{tpu_custom_call.1} parent=1 // pred_check
      _
    $region11: #{tpu_custom_call.1} parent=1 // pred_check_branch
      %18 = sbr.rel (0) target = $region13
    $region12: #{tpu_custom_call.1} parent=1 // pred_region
      _
    $region13: #{tpu_custom_call.1} parent=1 // pred_fallthru
      _
    // Predicated region
    $region14: #{tpu_custom_call.1} parent=1 // pred_check
      _
    $region15: #{tpu_custom_call.1} parent=1 // pred_check_branch
      %20 = sbr.rel (0) target = $region17
    $region16: #{tpu_custom_call.1} parent=1 // pred_region
      _
    $region17: #{tpu_custom_call.1} parent=1 // pred_fallthru
      _
    // Predicated region
    $region18: #{tpu_custom_call.1} parent=1 // pred_check
      _
    $region19: #{tpu_custom_call.1} parent=1 // pred_check_branch
      %22 = sbr.rel (0) target = $region21
    $region20: #{tpu_custom_call.1} parent=1 // pred_region
      _
    $region21: #{tpu_custom_call.1} parent=1 // pred_fallthru
      _
    %v23 = vld [vmem:[%s0] sm:$0xff]
    %v24 = vld [vmem:[%s0 + $0x8] sm:$0xff]
    %v25 = vld [vmem:[%s0 + $0x10] sm:$0xff]
    %v26 = vld [vmem:[%s0 + $0x18] sm:$0xff]
    %v27 = vld [vmem:[%s0 + $0x20] sm:$0x1f]
    %v28 = vld [vmem:[%s1] sm:$0xff]
    %v29 = vld [vmem:[%s1 + $0x8] sm:$0xff]
    %v30 = vld [vmem:[%s1 + $0x10] sm:$0xff]
    %v31 = vld [vmem:[%s1 + $0x18] sm:$0xff]
    %v32 = vld [vmem:[%s1 + $0x20] sm:$0xff]
    %v33 = vld [vmem:[%s1 + $0x28] sm:$0xff]
    %v34 = vld [vmem:[%s1 + $0x30] sm:$0xff]
    %v35 = vld [vmem:[%s1 + $0x38] sm:$0xff]
    %v36 = vld [vmem:[%s1 + $0x40] sm:$0xff]
    %v37 = vld [vmem:[%s1 + $0x48] sm:$0xff]
    %v38 = vld [vmem:[%s1 + $0x50] sm:$0xff]
    %v39 = vld [vmem:[%s1 + $0x58] sm:$0xff]
    %v40 = vld [vmem:[%s1 + $0x60] sm:$0xff]
    %v41 = vld [vmem:[%s1 + $0x68] sm:$0xff]
    %v42 = vld [vmem:[%s1 + $0x70] sm:$0xff]
    %v43 = vld [vmem:[%s1 + $0x78] sm:$0xff]
    %v44 = vld [vmem:[%s1 + $0x80] sm:$0xff]
    %v45 = vld [vmem:[%s1 + $0x88] sm:$0xff]
    %v46 = vld [vmem:[%s1 + $0x90] sm:$0xff]
    %v47 = vld [vmem:[%s1 + $0x98] sm:$0xff]
    %v48 = vld [vmem:[%s1 + $0xa0] sm:$0xff]
    %v49 = vld [vmem:[%s1 + $0xa8] sm:$0xff]
    %v50 = vld [vmem:[%s1 + $0xb0] sm:$0xff]
    %v51 = vld [vmem:[%s1 + $0xb8] sm:$0xff]
    %v52 = vld [vmem:[%s1 + $0xc0] sm:$0xff]
    %v53 = vld [vmem:[%s1 + $0xc8] sm:$0xff]
    %v54 = vld [vmem:[%s1 + $0xd0] sm:$0xff]
    %v55 = vld [vmem:[%s1 + $0xd8] sm:$0xff]
    %v56 = vld [vmem:[%s1 + $0xe0] sm:$0xff]
    %v57 = vld [vmem:[%s1 + $0xe8] sm:$0xff]
    %v58 = vld [vmem:[%s1 + $0xf0] sm:$0xff]
    %v59 = vld [vmem:[%s1 + $0xf8] sm:$0xff]
    %v60 = vld [vmem:[%s2] sm:$0xff]
    %v61 = vld [vmem:[%s2 + $0x8] sm:$0xff]
    %v62 = vld [vmem:[%s2 + $0x10] sm:$0xff]
    %v63 = vld [vmem:[%s2 + $0x18] sm:$0xff]
    %v64 = vld [vmem:[%s2 + $0x20] sm:$0xff]
    %v65 = vld [vmem:[%s2 + $0x28] sm:$0xff]
    %v66 = vld [vmem:[%s2 + $0x30] sm:$0xff]
    %v67 = vld [vmem:[%s2 + $0x38] sm:$0xff]
    %v68 = vld [vmem:[%s2 + $0x40] sm:$0xff]
    %v69 = vld [vmem:[%s2 + $0x48] sm:$0xff]
    %v70 = vld [vmem:[%s2 + $0x50] sm:$0xff]
    %v71 = vld [vmem:[%s2 + $0x58] sm:$0xff]
    %v72 = vld [vmem:[%s2 + $0x60] sm:$0xff]
    %v73 = vld [vmem:[%s2 + $0x68] sm:$0xff]
    %v74 = vld [vmem:[%s2 + $0x70] sm:$0xff]
    %v75 = vld [vmem:[%s2 + $0x78] sm:$0xff]
    %v76 = vld [vmem:[%s2 + $0x80] sm:$0xff]
    %v77 = vld [vmem:[%s2 + $0x88] sm:$0xff]
    %v78 = vld [vmem:[%s2 + $0x90] sm:$0xff]
    %v79 = vld [vmem:[%s2 + $0x98] sm:$0xff]
    %v80 = vld [vmem:[%s2 + $0xa0] sm:$0xff]
    %v81 = vld [vmem:[%s2 + $0xa8] sm:$0xff]
    %v82 = vld [vmem:[%s2 + $0xb0] sm:$0xff]
    %v83 = vld [vmem:[%s2 + $0xb8] sm:$0xff]
    %v84 = vld [vmem:[%s2 + $0xc0] sm:$0xff]
    %v85 = vld [vmem:[%s2 + $0xc8] sm:$0xff]
    %v86 = vld [vmem:[%s2 + $0xd0] sm:$0xff]
    %v87 = vld [vmem:[%s2 + $0xd8] sm:$0xff]
    %v88 = vld [vmem:[%s2 + $0xe0] sm:$0xff]
    %v89 = vld [vmem:[%s2 + $0xe8] sm:$0xff]
    %v90 = vld [vmem:[%s2 + $0xf0] sm:$0xff]
    %v91 = vld [vmem:[%s2 + $0xf8] sm:$0xff]
    %93 = vset.pattern.permute.xlu0 0
    %94 = vperm.xlu0 %93, %v60
    %v95 = vpop.permute.xlu0 %94
    %98 = vset.pattern.permute.xlu0 0
    %99 = vperm.xlu0 %98, %v61
    %v100 = vpop.permute.xlu0 %99
    %103 = vset.pattern.permute.xlu0 0
    %104 = vperm.xlu0 %103, %v62
    %v105 = vpop.permute.xlu0 %104
    %108 = vset.pattern.permute.xlu0 0
    %109 = vperm.xlu0 %108, %v63
    %v110 = vpop.permute.xlu0 %109
    %113 = vset.pattern.permute.xlu0 0
    %114 = vperm.xlu0 %113, %v64
    %v115 = vpop.permute.xlu0 %114
    %118 = vset.pattern.permute.xlu0 0
    %119 = vperm.xlu0 %118, %v65
    %v120 = vpop.permute.xlu0 %119
    %123 = vset.pattern.permute.xlu0 0
    %124 = vperm.xlu0 %123, %v66
    %v125 = vpop.permute.xlu0 %124
    %128 = vset.pattern.permute.xlu0 0
    %129 = vperm.xlu0 %128, %v67
    %v130 = vpop.permute.xlu0 %129
    %133 = vset.pattern.permute.xlu0 0
    %134 = vperm.xlu0 %133, %v68
    %v135 = vpop.permute.xlu0 %134
    %138 = vset.pattern.permute.xlu0 0
    %139 = vperm.xlu0 %138, %v69
    %v140 = vpop.permute.xlu0 %139
    %143 = vset.pattern.permute.xlu0 0
    %144 = vperm.xlu0 %143, %v70
    %v145 = vpop.permute.xlu0 %144
    %148 = vset.pattern.permute.xlu0 0
    %149 = vperm.xlu0 %148, %v71
    %v150 = vpop.permute.xlu0 %149
    %153 = vset.pattern.permute.xlu0 0
    %154 = vperm.xlu0 %153, %v72
    %v155 = vpop.permute.xlu0 %154
    %158 = vset.pattern.permute.xlu0 0
    %159 = vperm.xlu0 %158, %v73
    %v160 = vpop.permute.xlu0 %159
    %163 = vset.pattern.permute.xlu0 0
    %164 = vperm.xlu0 %163, %v74
    %v165 = vpop.permute.xlu0 %164
    %168 = vset.pattern.permute.xlu0 0
    %169 = vperm.xlu0 %168, %v75
    %v170 = vpop.permute.xlu0 %169
    %173 = vset.pattern.permute.xlu0 0
    %174 = vperm.xlu0 %173, %v76
    %v175 = vpop.permute.xlu0 %174
    %178 = vset.pattern.permute.xlu0 0
    %179 = vperm.xlu0 %178, %v77
    %v180 = vpop.permute.xlu0 %179
    %183 = vset.pattern.permute.xlu0 0
    %184 = vperm.xlu0 %183, %v78
    %v185 = vpop.permute.xlu0 %184
    %188 = vset.pattern.permute.xlu0 0
    %189 = vperm.xlu0 %188, %v79
    %v190 = vpop.permute.xlu0 %189
    %193 = vset.pattern.permute.xlu0 0
    %194 = vperm.xlu0 %193, %v80
    %v195 = vpop.permute.xlu0 %194
    %198 = vset.pattern.permute.xlu0 0
    %199 = vperm.xlu0 %198, %v81
    %v200 = vpop.permute.xlu0 %199
    %203 = vset.pattern.permute.xlu0 0
    %204 = vperm.xlu0 %203, %v82
    %v205 = vpop.permute.xlu0 %204
    %208 = vset.pattern.permute.xlu0 0
    %209 = vperm.xlu0 %208, %v83
    %v210 = vpop.permute.xlu0 %209
    %213 = vset.pattern.permute.xlu0 0
    %214 = vperm.xlu0 %213, %v84
    %v215 = vpop.permute.xlu0 %214
    %218 = vset.pattern.permute.xlu0 0
    %219 = vperm.xlu0 %218, %v85
    %v220 = vpop.permute.xlu0 %219
    %223 = vset.pattern.permute.xlu0 0
    %224 = vperm.xlu0 %223, %v86
    %v225 = vpop.permute.xlu0 %224
    %228 = vset.pattern.permute.xlu0 0
    %229 = vperm.xlu0 %228, %v87
    %v230 = vpop.permute.xlu0 %229
    %233 = vset.pattern.permute.xlu0 0
    %234 = vperm.xlu0 %233, %v88
    %v235 = vpop.permute.xlu0 %234
    %238 = vset.pattern.permute.xlu0 0
    %239 = vperm.xlu0 %238, %v89
    %v240 = vpop.permute.xlu0 %239
    %243 = vset.pattern.permute.xlu0 0
    %244 = vperm.xlu0 %243, %v90
    %v245 = vpop.permute.xlu0 %244
    %248 = vset.pattern.permute.xlu0 0
    %249 = vperm.xlu0 %248, %v91
    %v250 = vpop.permute.xlu0 %249
    %vm252 = vcmask 302080
    %v254 = vsel %vm252, %v28, 0
    %v257 = vsel %vm252, %v29, 0
    %v260 = vsel %vm252, %v30, 0
    %v263 = vsel %vm252, %v31, 0
    %v266 = vsel %vm252, %v32, 0
    %v269 = vsel %vm252, %v33, 0
    %v272 = vsel %vm252, %v34, 0
    %v275 = vsel %vm252, %v35, 0
    %v278 = vsel %vm252, %v36, 0
    %v281 = vsel %vm252, %v37, 0
    %v284 = vsel %vm252, %v38, 0
    %v287 = vsel %vm252, %v39, 0
    %v290 = vsel %vm252, %v40, 0
    %v293 = vsel %vm252, %v41, 0
    %v296 = vsel %vm252, %v42, 0
    %v299 = vsel %vm252, %v43, 0
    %v302 = vsel %vm252, %v44, 0
    %v305 = vsel %vm252, %v45, 0
    %v308 = vsel %vm252, %v46, 0
    %v311 = vsel %vm252, %v47, 0
    %v314 = vsel %vm252, %v48, 0
    %v317 = vsel %vm252, %v49, 0
    %v320 = vsel %vm252, %v50, 0
    %v323 = vsel %vm252, %v51, 0
    %v326 = vsel %vm252, %v52, 0
    %v329 = vsel %vm252, %v53, 0
    %v332 = vsel %vm252, %v54, 0
    %v335 = vsel %vm252, %v55, 0
    %v338 = vsel %vm252, %v56, 0
    %v341 = vsel %vm252, %v57, 0
    %v344 = vsel %vm252, %v58, 0
    %v347 = vsel %vm252, %v59, 0
    %vm349 = vcmask 1044480
    %v351 = vsel %vm349, %v27, 0
    %353 = vmatprep.subr.mxu0 0.0
    %354 = vmatpush1.msra.mxu0 0.0
    %355 = vmatprep.subr.mxu0 0.0
    %356 = vmatpush1.msra.mxu0 0.0
    %357 = vmatprep.subr.mxu0 0.0
    %358 = vmatpush1.msra.mxu0 0.0
    %359 = vmatprep.subr.mxu0 0.0
    %360 = vmatpush1.msra.mxu0 0.0
    %361 = vmatprep.subr.mxu0 0.0
    %362 = vmatpush1.msra.mxu0 0.0
    %363 = vmatprep.subr.mxu0 0.0
    %364 = vmatpush1.msra.mxu0 0.0
    %365 = vmatprep.subr.mxu0 0.0
    %366 = vmatpush1.msra.mxu0 0.0
    %367 = vmatprep.subr.mxu0 0.0
    %368 = vmatpush1.msra.mxu0 0.0
    %369 = vmatprep.subr.mxu0 0.0
    %370 = vmatpush1.msra.mxu0 0.0
    %371 = vmatprep.subr.mxu0 0.0
    %372 = vmatpush1.msra.mxu0 0.0
    %373 = vmatprep.subr.mxu0 0.0
    %374 = vmatpush1.msra.mxu0 0.0
    %375 = vmatprep.subr.mxu0 0.0
    %376 = vmatpush1.msra.mxu0 %v351
    %377 = vmatprep.subr.mxu0 0.0
    %378 = vmatpush1.msra.mxu0 %v26
    %379 = vmatprep.subr.mxu0 0.0
    %380 = vmatpush1.msra.mxu0 %v25
    %381 = vmatprep.subr.mxu0 0.0
    %382 = vmatpush1.msra.mxu0 %v24
    %383 = vmatprep.subr.mxu0 0.0
    %384 = vmatpush1.msra.mxu0 %v23
    %385 = vmatprep.subr.mxu0 0.0
    %386 = vmatpush2.msra.mxu0 0.0
    %387 = vmatprep.subr.mxu0 0.0
    %388 = vmatpush2.msra.mxu0 0.0
    %389 = vmatprep.subr.mxu0 0.0
    %390 = vmatpush2.msra.mxu0 0.0
    %391 = vmatprep.subr.mxu0 0.0
    %392 = vmatpush2.msra.mxu0 0.0
    %393 = vmatprep.subr.mxu0 0.0
    %394 = vmatpush2.msra.mxu0 0.0
    %395 = vmatprep.subr.mxu0 0.0
    %396 = vmatpush2.msra.mxu0 0.0
    %397 = vmatprep.subr.mxu0 0.0
    %398 = vmatpush2.msra.mxu0 0.0
    %399 = vmatprep.subr.mxu0 0.0
    %400 = vmatpush2.msra.mxu0 0.0
    %401 = vmatprep.subr.mxu0 0.0
    %402 = vmatpush2.msra.mxu0 0.0
    %403 = vmatprep.subr.mxu0 0.0
    %404 = vmatpush2.msra.mxu0 0.0
    %405 = vmatprep.subr.mxu0 0.0
    %406 = vmatpush2.msra.mxu0 0.0
    %407 = vmatprep.subr.mxu0 0.0
    %408 = vmatpush2.msra.mxu0 0.0
    %409 = vmatprep.subr.mxu0 0.0
    %410 = vmatpush2.msra.mxu0 0.0
    %411 = vmatprep.subr.mxu0 0.0
    %412 = vmatpush2.msra.mxu0 0.0
    %413 = vmatprep.subr.mxu0 0.0
    %414 = vmatpush2.msra.mxu0 0.0
    %415 = vmatprep.subr.mxu0 0.0
    %416 = vmatpush2.msra.mxu0 0.0
    %417 = vmatprep.mubr.f32.mxu0 0.0
    %418 = vmatmul.mubr.f32.gmra.mxu0 %v254
    %v419 = vpop.f32.mrf.mxu0
    %v420 = vadd.f32 %v95, %v419
    %v421 = vpop.f32.mrf.mxu0
    %422 = vmatprep.mubr.f32.mxu0 0.0
    %423 = vmatmul.mubr.f32.gmra.mxu0 %v257
    %v424 = vpop.f32.mrf.mxu0
    %v425 = vadd.f32 %v100, %v424
    %v426 = vpop.f32.mrf.mxu0
    %427 = vmatprep.mubr.f32.mxu0 0.0
    %428 = vmatmul.mubr.f32.gmra.mxu0 %v260
    %v429 = vpop.f32.mrf.mxu0
    %v430 = vadd.f32 %v105, %v429
    %v431 = vpop.f32.mrf.mxu0
    %432 = vmatprep.mubr.f32.mxu0 0.0
    %433 = vmatmul.mubr.f32.gmra.mxu0 %v263
    %v434 = vpop.f32.mrf.mxu0
    %v435 = vadd.f32 %v110, %v434
    %v436 = vpop.f32.mrf.mxu0
    %437 = vmatprep.mubr.f32.mxu0 0.0
    %438 = vmatmul.mubr.f32.gmra.mxu0 %v266
    %v439 = vpop.f32.mrf.mxu0
    %v440 = vadd.f32 %v115, %v439
    %v441 = vpop.f32.mrf.mxu0
    %442 = vmatprep.mubr.f32.mxu0 0.0
    %443 = vmatmul.mubr.f32.gmra.mxu0 %v269
    %v444 = vpop.f32.mrf.mxu0
    %v445 = vadd.f32 %v120, %v444
    %v446 = vpop.f32.mrf.mxu0
    %447 = vmatprep.mubr.f32.mxu0 0.0
    %448 = vmatmul.mubr.f32.gmra.mxu0 %v272
    %v449 = vpop.f32.mrf.mxu0
    %v450 = vadd.f32 %v125, %v449
    %v451 = vpop.f32.mrf.mxu0
    %452 = vmatprep.mubr.f32.mxu0 0.0
    %453 = vmatmul.mubr.f32.gmra.mxu0 %v275
    %v454 = vpop.f32.mrf.mxu0
    %v455 = vadd.f32 %v130, %v454
    %v456 = vpop.f32.mrf.mxu0
    %457 = vmatprep.mubr.f32.mxu0 0.0
    %458 = vmatmul.mubr.f32.gmra.mxu0 %v278
    %v459 = vpop.f32.mrf.mxu0
    %v460 = vadd.f32 %v135, %v459
    %v461 = vpop.f32.mrf.mxu0
    %462 = vmatprep.mubr.f32.mxu0 0.0
    %463 = vmatmul.mubr.f32.gmra.mxu0 %v281
    %v464 = vpop.f32.mrf.mxu0
    %v465 = vadd.f32 %v140, %v464
    %v466 = vpop.f32.mrf.mxu0
    %467 = vmatprep.mubr.f32.mxu0 0.0
    %468 = vmatmul.mubr.f32.gmra.mxu0 %v284
    %v469 = vpop.f32.mrf.mxu0
    %v470 = vadd.f32 %v145, %v469
    %v471 = vpop.f32.mrf.mxu0
    %472 = vmatprep.mubr.f32.mxu0 0.0
    %473 = vmatmul.mubr.f32.gmra.mxu0 %v287
    %v474 = vpop.f32.mrf.mxu0
    %v475 = vadd.f32 %v150, %v474
    %v476 = vpop.f32.mrf.mxu0
    %477 = vmatprep.mubr.f32.mxu0 0.0
    %478 = vmatmul.mubr.f32.gmra.mxu0 %v290
    %v479 = vpop.f32.mrf.mxu0
    %v480 = vadd.f32 %v155, %v479
    %v481 = vpop.f32.mrf.mxu0
    %482 = vmatprep.mubr.f32.mxu0 0.0
    %483 = vmatmul.mubr.f32.gmra.mxu0 %v293
    %v484 = vpop.f32.mrf.mxu0
    %v485 = vadd.f32 %v160, %v484
    %v486 = vpop.f32.mrf.mxu0
    %487 = vmatprep.mubr.f32.mxu0 0.0
    %488 = vmatmul.mubr.f32.gmra.mxu0 %v296
    %v489 = vpop.f32.mrf.mxu0
    %v490 = vadd.f32 %v165, %v489
    %v491 = vpop.f32.mrf.mxu0
    %492 = vmatprep.mubr.f32.mxu0 0.0
    %493 = vmatmul.mubr.f32.gmra.mxu0 %v299
    %v494 = vpop.f32.mrf.mxu0
    %v495 = vadd.f32 %v170, %v494
    %v496 = vpop.f32.mrf.mxu0
    %497 = vmatprep.mubr.f32.mxu0 0.0
    %498 = vmatmul.mubr.f32.gmra.mxu0 %v302
    %v499 = vpop.f32.mrf.mxu0
    %v500 = vadd.f32 %v175, %v499
    %v501 = vpop.f32.mrf.mxu0
    %502 = vmatprep.mubr.f32.mxu0 0.0
    %503 = vmatmul.mubr.f32.gmra.mxu0 %v305
    %v504 = vpop.f32.mrf.mxu0
    %v505 = vadd.f32 %v180, %v504
    %v506 = vpop.f32.mrf.mxu0
    %507 = vmatprep.mubr.f32.mxu0 0.0
    %508 = vmatmul.mubr.f32.gmra.mxu0 %v308
    %v509 = vpop.f32.mrf.mxu0
    %v510 = vadd.f32 %v185, %v509
    %v511 = vpop.f32.mrf.mxu0
    %512 = vmatprep.mubr.f32.mxu0 0.0
    %513 = vmatmul.mubr.f32.gmra.mxu0 %v311
    %v514 = vpop.f32.mrf.mxu0
    %v515 = vadd.f32 %v190, %v514
    %v516 = vpop.f32.mrf.mxu0
    %517 = vmatprep.mubr.f32.mxu0 0.0
    %518 = vmatmul.mubr.f32.gmra.mxu0 %v314
    %v519 = vpop.f32.mrf.mxu0
    %v520 = vadd.f32 %v195, %v519
    %v521 = vpop.f32.mrf.mxu0
    %522 = vmatprep.mubr.f32.mxu0 0.0
    %523 = vmatmul.mubr.f32.gmra.mxu0 %v317
    %v524 = vpop.f32.mrf.mxu0
    %v525 = vadd.f32 %v200, %v524
    %v526 = vpop.f32.mrf.mxu0
    %527 = vmatprep.mubr.f32.mxu0 0.0
    %528 = vmatmul.mubr.f32.gmra.mxu0 %v320
    %v529 = vpop.f32.mrf.mxu0
    %v530 = vadd.f32 %v205, %v529
    %v531 = vpop.f32.mrf.mxu0
    %532 = vmatprep.mubr.f32.mxu0 0.0
    %533 = vmatmul.mubr.f32.gmra.mxu0 %v323
    %v534 = vpop.f32.mrf.mxu0
    %v535 = vadd.f32 %v210, %v534
    %v536 = vpop.f32.mrf.mxu0
    %537 = vmatprep.mubr.f32.mxu0 0.0
    %538 = vmatmul.mubr.f32.gmra.mxu0 %v326
    %v539 = vpop.f32.mrf.mxu0
    %v540 = vadd.f32 %v215, %v539
    %v541 = vpop.f32.mrf.mxu0
    %542 = vmatprep.mubr.f32.mxu0 0.0
    %543 = vmatmul.mubr.f32.gmra.mxu0 %v329
    %v544 = vpop.f32.mrf.mxu0
    %v545 = vadd.f32 %v220, %v544
    %v546 = vpop.f32.mrf.mxu0
    %547 = vmatprep.mubr.f32.mxu0 0.0
    %548 = vmatmul.mubr.f32.gmra.mxu0 %v332
    %v549 = vpop.f32.mrf.mxu0
    %v550 = vadd.f32 %v225, %v549
    %v551 = vpop.f32.mrf.mxu0
    %552 = vmatprep.mubr.f32.mxu0 0.0
    %553 = vmatmul.mubr.f32.gmra.mxu0 %v335
    %v554 = vpop.f32.mrf.mxu0
    %v555 = vadd.f32 %v230, %v554
    %v556 = vpop.f32.mrf.mxu0
    %557 = vmatprep.mubr.f32.mxu0 0.0
    %558 = vmatmul.mubr.f32.gmra.mxu0 %v338
    %v559 = vpop.f32.mrf.mxu0
    %v560 = vadd.f32 %v235, %v559
    %v561 = vpop.f32.mrf.mxu0
    %562 = vmatprep.mubr.f32.mxu0 0.0
    %563 = vmatmul.mubr.f32.gmra.mxu0 %v341
    %v564 = vpop.f32.mrf.mxu0
    %v565 = vadd.f32 %v240, %v564
    %v566 = vpop.f32.mrf.mxu0
    %567 = vmatprep.mubr.f32.mxu0 0.0
    %568 = vmatmul.mubr.f32.gmra.mxu0 %v344
    %v569 = vpop.f32.mrf.mxu0
    %v570 = vadd.f32 %v245, %v569
    %v571 = vpop.f32.mrf.mxu0
    %572 = vmatprep.mubr.f32.mxu0 0.0
    %573 = vmatmul.mubr.f32.gmra.mxu0 %v347
    %v574 = vpop.f32.mrf.mxu0
    %v575 = vadd.f32 %v250, %v574
    %v576 = vpop.f32.mrf.mxu0
    %577 = vdwg.mxu0
    %v578 = vld [vmem:[%s0 + $0x20] sm:$0x1]
    %v579 = vand.u32 2147483647, %v420
    %v580 = vand.u32 2147483647, %v425
    %v581 = vand.u32 2147483647, %v430
    %v582 = vand.u32 2147483647, %v435
    %v583 = vlaneseq
    %v584 = vshrl.u32 %v583, 7
    %v585 = vsub.s32 0, %v584
    %v586 = vrot.slane %v578, %v585
    %v587 = vmul.f32 %v586, %v579
    %v588 = vmul.f32 %v586, %v580
    %v589 = vmul.f32 %v586, %v581
    %v590 = vmul.f32 %v586, %v582
    %v591 = vadd.f32 %v520, %v587
    %v592 = vadd.f32 %v525, %v588
    %v593 = vadd.f32 %v530, %v589
    %v594 = vadd.f32 %v535, %v590
    %v595 = vld [vmem:[%s0 + $0x21] sm:$0x1]
    %v596 = vand.u32 2147483647, %v440
    %v597 = vand.u32 2147483647, %v445
    %v598 = vand.u32 2147483647, %v450
    %v599 = vand.u32 2147483647, %v455
    %v600 = vlaneseq
    %v601 = vshrl.u32 %v600, 7
    %v602 = vsub.s32 0, %v601
    %v603 = vrot.slane %v595, %v602
    %v604 = vmul.f32 %v603, %v596
    %v605 = vmul.f32 %v603, %v597
    %v606 = vmul.f32 %v603, %v598
    %v607 = vmul.f32 %v603, %v599
    %v608 = vadd.f32 %v591, %v604
    %v609 = vadd.f32 %v592, %v605
    %v610 = vadd.f32 %v593, %v606
    %v611 = vadd.f32 %v594, %v607
    %v612 = vld [vmem:[%s0 + $0x22] sm:$0x1]
    %v613 = vand.u32 2147483647, %v460
    %v614 = vand.u32 2147483647, %v465
    %v615 = vand.u32 2147483647, %v470
    %v616 = vand.u32 2147483647, %v475
    %v617 = vlaneseq
    %v618 = vshrl.u32 %v617, 7
    %v619 = vsub.s32 0, %v618
    %v620 = vrot.slane %v612, %v619
    %v621 = vmul.f32 %v620, %v613
    %v622 = vmul.f32 %v620, %v614
    %v623 = vmul.f32 %v620, %v615
    %v624 = vmul.f32 %v620, %v616
    %v625 = vadd.f32 %v608, %v621
    %v626 = vadd.f32 %v609, %v622
    %v627 = vadd.f32 %v610, %v623
    %v628 = vadd.f32 %v611, %v624
    %v629 = vld [vmem:[%s0 + $0x23] sm:$0x1]
    %v630 = vand.u32 2147483647, %v480
    %v631 = vand.u32 2147483647, %v485
    %v632 = vand.u32 2147483647, %v490
    %v633 = vand.u32 2147483647, %v495
    %v634 = vlaneseq
    %v635 = vshrl.u32 %v634, 7
    %v636 = vsub.s32 0, %v635
    %v637 = vrot.slane %v629, %v636
    %v638 = vmul.f32 %v637, %v630
    %v639 = vmul.f32 %v637, %v631
    %v640 = vmul.f32 %v637, %v632
    %v641 = vmul.f32 %v637, %v633
    %v642 = vadd.f32 %v625, %v638
    %v643 = vadd.f32 %v626, %v639
    %v644 = vadd.f32 %v627, %v640
    %v645 = vadd.f32 %v628, %v641
    %v646 = vld [vmem:[%s0 + $0x24] sm:$0x1]
    %v647 = vand.u32 2147483647, %v500
    %v648 = vand.u32 2147483647, %v505
    %v649 = vand.u32 2147483647, %v510
    %v650 = vand.u32 2147483647, %v515
    %v651 = vlaneseq
    %v652 = vshrl.u32 %v651, 7
    %v653 = vsub.s32 0, %v652
    %v654 = vrot.slane %v646, %v653
    %v655 = vmul.f32 %v654, %v647
    %v656 = vmul.f32 %v654, %v648
    %v657 = vmul.f32 %v654, %v649
    %v658 = vmul.f32 %v654, %v650
    %v659 = vadd.f32 %v642, %v655
    %v660 = vadd.f32 %v643, %v656
    %v661 = vadd.f32 %v644, %v657
    %v662 = vadd.f32 %v645, %v658
    %vm663 = vcmp.gt.f32.partialorder %v659, 0.0
    %vm664 = vcmp.gt.f32.partialorder %v660, 0.0
    %vm665 = vcmp.gt.f32.partialorder %v661, 0.0
    %vm666 = vcmp.gt.f32.partialorder %v662, 0.0
    %v667 = vmin.f32 %v659, 0.0
    %v668 = vmin.f32 %v660, 0.0
    %v669 = vmin.f32 %v661, 0.0
    %v670 = vmin.f32 %v662, 0.0
    %v671 = vmul.f32 %v667, 1.442695
    %v672 = vpow.pop %v671
    %v673 = vmul.f32 %v668, 1.442695
    %v674 = vpow.pop %v673
    %v675 = vmul.f32 %v669, 1.442695
    %v676 = vpow.pop %v675
    %v677 = vmul.f32 %v670, 1.442695
    %v678 = vpow.pop %v677
    %v679 = vsub.f32 %v672, 1.0
    %v680 = vsub.f32 %v674, 1.0
    %v681 = vsub.f32 %v676, 1.0
    %v682 = vsub.f32 %v678, 1.0
    %v683 = vsel %vm663, %v659, %v679
    %v684 = vsel %vm664, %v660, %v680
    %v685 = vsel %vm665, %v661, %v681
    %v686 = vsel %vm666, %v662, %v682
    %v687 = vand.u32 2147483647, %v540
    %v688 = vand.u32 2147483647, %v545
    %v689 = vand.u32 2147483647, %v550
    %v690 = vand.u32 2147483647, %v555
    %v691 = vmax.f32 %v560, 0.0
    %v692 = vmax.f32 %v565, 0.0
    %v693 = vmax.f32 %v570, 0.0
    %v694 = vmax.f32 %v575, 0.0
    %v695 = vmul.f32 %v683, %v687
    %v696 = vmul.f32 %v684, %v688
    %v697 = vmul.f32 %v685, %v689
    %v698 = vmul.f32 %v686, %v690
    %v699 = vld [vmem:[%s3] sm:$0xff]
    %v700 = vld [vmem:[%s3 + $0x8] sm:$0xff]
    %v701 = vld [vmem:[%s3 + $0x10] sm:$0xff]
    %v702 = vld [vmem:[%s3 + $0x18] sm:$0xff]
    %704 = vset.pattern.permute.xlu0 0
    %705 = vperm.xlu0 %704, %v699
    %v706 = vpop.permute.xlu0 %705
    %709 = vset.pattern.permute.xlu0 0
    %710 = vperm.xlu0 %709, %v700
    %v711 = vpop.permute.xlu0 %710
    %714 = vset.pattern.permute.xlu0 0
    %715 = vperm.xlu0 %714, %v701
    %v716 = vpop.permute.xlu0 %715
    %719 = vset.pattern.permute.xlu0 0
    %720 = vperm.xlu0 %719, %v702
    %v721 = vpop.permute.xlu0 %720
    %v723 = vmul.f32 %v691, %v706
    %v724 = vmul.f32 %v692, %v711
    %v725 = vmul.f32 %v693, %v716
    %v726 = vmul.f32 %v694, %v721
    %v727 = vadd.f32 %v695, %v723
    %v728 = vadd.f32 %v696, %v724
    %v729 = vadd.f32 %v697, %v725
    %v730 = vadd.f32 %v698, %v726
    %v731 = vld [vmem:[#allocation2] sm:$0x1]
    %733 = vset.pattern.permute.xlu0 0
    %734 = vperm.xlu0 %733, %v731
    %v735 = vpop.permute.xlu0 %734
    %v737 = vlaneseq
    %v738 = vshrl.u32 %v737, 7
    %v739 = vsub.s32 0, %v738
    %v740 = vrot.slane %v735, %v739
    %vm741 = vcmask 261120
    %v743 = vsel %vm741, 1.0, 0
    %745 = vmatprep.subr.mxu0 0.0
    %746 = vmatpush1.msra.mxu0 0.0
    %747 = vmatprep.subr.mxu0 0.0
    %748 = vmatpush1.msra.mxu0 0.0
    %749 = vmatprep.subr.mxu0 0.0
    %750 = vmatpush1.msra.mxu0 0.0
    %751 = vmatprep.subr.mxu0 0.0
    %752 = vmatpush1.msra.mxu0 0.0
    %753 = vmatprep.subr.mxu0 0.0
    %754 = vmatpush1.msra.mxu0 0.0
    %755 = vmatprep.subr.mxu0 0.0
    %756 = vmatpush1.msra.mxu0 0.0
    %757 = vmatprep.subr.mxu0 0.0
    %758 = vmatpush1.msra.mxu0 0.0
    %759 = vmatprep.subr.mxu0 0.0
    %760 = vmatpush1.msra.mxu0 0.0
    %761 = vmatprep.subr.mxu0 0.0
    %762 = vmatpush1.msra.mxu0 0.0
    %763 = vmatprep.subr.mxu0 0.0
    %764 = vmatpush1.msra.mxu0 0.0
    %765 = vmatprep.subr.mxu0 0.0
    %766 = vmatpush1.msra.mxu0 0.0
    %767 = vmatprep.subr.mxu0 0.0
    %768 = vmatpush1.msra.mxu0 0.0
    %769 = vmatprep.subr.mxu0 0.0
    %770 = vmatpush1.msra.mxu0 %v730
    %771 = vmatprep.subr.mxu0 0.0
    %772 = vmatpush1.msra.mxu0 %v729
    %773 = vmatprep.subr.mxu0 0.0
    %774 = vmatpush1.msra.mxu0 %v728
    %775 = vmatprep.subr.mxu0 0.0
    %776 = vmatpush1.msra.mxu0 %v727
    %777 = vmatprep.subr.mxu0 0.0
    %778 = vmatpush2.msra.mxu0 0.0
    %779 = vmatprep.subr.mxu0 0.0
    %780 = vmatpush2.msra.mxu0 0.0
    %781 = vmatprep.subr.mxu0 0.0
    %782 = vmatpush2.msra.mxu0 0.0
    %783 = vmatprep.subr.mxu0 0.0
    %784 = vmatpush2.msra.mxu0 0.0
    %785 = vmatprep.subr.mxu0 0.0
    %786 = vmatpush2.msra.mxu0 0.0
    %787 = vmatprep.subr.mxu0 0.0
    %788 = vmatpush2.msra.mxu0 0.0
    %789 = vmatprep.subr.mxu0 0.0
    %790 = vmatpush2.msra.mxu0 0.0
    %791 = vmatprep.subr.mxu0 0.0
    %792 = vmatpush2.msra.mxu0 0.0
    %793 = vmatprep.subr.mxu0 0.0
    %794 = vmatpush2.msra.mxu0 0.0
    %795 = vmatprep.subr.mxu0 0.0
    %796 = vmatpush2.msra.mxu0 0.0
    %797 = vmatprep.subr.mxu0 0.0
    %798 = vmatpush2.msra.mxu0 0.0
    %799 = vmatprep.subr.mxu0 0.0
    %800 = vmatpush2.msra.mxu0 0.0
    %801 = vmatprep.subr.mxu0 0.0
    %802 = vmatpush2.msra.mxu0 0.0
    %803 = vmatprep.subr.mxu0 0.0
    %804 = vmatpush2.msra.mxu0 0.0
    %805 = vmatprep.subr.mxu0 0.0
    %806 = vmatpush2.msra.mxu0 0.0
    %807 = vmatprep.subr.mxu0 0.0
    %808 = vmatpush2.msra.mxu0 0.0
    %809 = vmatprep.mubr.f32.mxu0 0.0
    %810 = vmatmul.mubr.f32.gmra.mxu0 %v743
    %v811 = vpop.f32.mrf.mxu0
    %v812 = vadd.f32 %v740, %v811
    %v813 = vpop.f32.mrf.mxu0
    %814 = vdwg.mxu0
    %815 = vst [vmem:[#allocation3] sm:$0x1] %v812
    // Predicated region
    $region22: #{tpu_custom_call.1} parent=1 // pred_check
      _
    $region23: #{tpu_custom_call.1} parent=1 // pred_check_branch
      %817 = sbr.rel (0) target = $region25
    $region24: #{tpu_custom_call.1} parent=1 // pred_region
      %s819 = ssub.s32 16, 16
      %820 = vsyncadd [#allocation4], %s819
      %s822 = sshll.u32 [#allocation3], 4
      %s823 = int_to_ptr.vmem [resolvable:$true] %s822
      %825 = dma.vmem_to_hbm [thread:$0]  %s823, 16, %s5, [#allocation4]
    $region25: #{tpu_custom_call.1} parent=1 // pred_fallthru
      _
    // Predicated region
    $region26: #{tpu_custom_call.1} parent=1 // pred_check
      _
    $region27: #{tpu_custom_call.1} parent=1 // pred_check_branch
      %827 = sbr.rel (0) target = $region29
    $region28: #{tpu_custom_call.1} parent=1 // pred_region
      %828 = dma.done [#allocation4], 16
    $region29: #{tpu_custom_call.1} parent=1 // pred_fallthru
      _
    %829 = vsyncpa [#allocation4], 1

</llo_original>
